<compile_context>
chip_gen: v7x
topology: tpu7x:2x2x1
jax: 0.10.0
libtpu: 0.0.40
codegen_flags: <defaults>
</compile_context>

<pallas_src>
import jax
import jax.numpy as jnp
from jax.experimental import pallas as pl
from jax.experimental.pallas import tpu as pltpu


def mlp_kernel(x_ref, w1_ref, b1_ref, w2_ref, b2_ref, w3_ref, b3_ref, o_ref):
    x = x_ref[...]                                               # (tm, dim) bf16

    # fc_1 + ReLU  (bf16 MXU inputs, f32 accumulation)
    h1 = jnp.dot(x, w1_ref[...], preferred_element_type=jnp.float32) + b1_ref[...]
    h1 = jnp.maximum(h1, 0.0)                                    # (tm, 80) f32
    # dropout -> identity (eval mode)

    # fc_2 + ReLU
    h2 = jnp.dot(h1.astype(jnp.bfloat16), w2_ref[...],
                 preferred_element_type=jnp.float32) + b2_ref[...]
    h2 = jnp.maximum(h2, 0.0)                                    # (tm, 10) f32
    # dropout -> identity (eval mode)

    # fc_3, computed transposed:  (1, 10) . (tm, 10)^T -> (1, tm)
    # so the output store is lane-dense (batch maps to lanes) instead of a
    # (tm, 1) column that would force masked single-lane stores / strided DMA.
    out_row = jax.lax.dot_general(
        w3_ref[...], h2.astype(jnp.bfloat16),
        dimension_numbers=(((1,), (1,)), ((), ())),
        preferred_element_type=jnp.float32)                      # (1, tm)
    out_row = out_row + b3_ref[...]                              # (1, 1) broadcast

    o_ref[...] = out_row.reshape(o_ref.shape).astype(o_ref.dtype)


def _round_up(a, b):
    return ((a + b - 1) // b) * b


def _choose_tm(n, tm_max=512):
    # Large tiles amortize per-grid-step overhead; cap so the grid keeps >=4
    # steps (v7x has 2 TensorCores + software pipelining wants >1 step); round
    # to the 8-row sublane granularity.
    tm = min(tm_max, max(8, pl.cdiv(n, 4)))
    return _round_up(tm, 8)


def mlp_forward(x, params, *, tm_max=512):
    """x: (N, dim) float32. Returns (N,) float32, matching .squeeze(dim=1)."""
    w1, b1, w2, b2, w3, b3 = params
    N, dim = x.shape

    tm = _choose_tm(N, tm_max)
    num_tiles = pl.cdiv(N, tm)
    n_pad = num_tiles * tm

    # bf16 inputs into the MXU (halves HBM bytes of the dominant tensor);
    # accumulation / bias / ReLU stay f32 inside the kernel.
    xb = x.astype(jnp.bfloat16)
    if n_pad != N:
        xb = jnp.pad(xb, ((0, n_pad - N), (0, 0)))
    w1b = w1.astype(jnp.bfloat16)
    w2b = w2.astype(jnp.bfloat16)
    w3b = w3.astype(jnp.bfloat16)

    out = pl.pallas_call(
        mlp_kernel,
        out_shape=jax.ShapeDtypeStruct((num_tiles, 1, tm), jnp.float32),
        grid_spec=pltpu.PrefetchScalarGridSpec(
            num_scalar_prefetch=0,
            grid=(num_tiles,),
            in_specs=[
                pl.BlockSpec((tm, dim), lambda i: (i, 0)),     # x tile (bf16)
                pl.BlockSpec(w1b.shape, lambda i: (0, 0)),     # W1 (dim, 80) bf16
                pl.BlockSpec(b1.shape, lambda i: (0, 0)),      # b1 (1, 80) f32
                pl.BlockSpec(w2b.shape, lambda i: (0, 0)),     # W2 (80, 10) bf16
                pl.BlockSpec(b2.shape, lambda i: (0, 0)),      # b2 (1, 10) f32
                pl.BlockSpec(w3b.shape, lambda i: (0, 0)),     # W3 (1, 10) bf16
                pl.BlockSpec(b3.shape, lambda i: (0, 0)),      # b3 (1, 1) f32
            ],
            # lane-dense output rows: one (1, 1, tm) contiguous slab per step
            out_specs=pl.BlockSpec((1, 1, tm), lambda i: (i, 0, 0)),
        ),
        compiler_params=pltpu.CompilerParams(
            dimension_semantics=("parallel",),
        ),
    )(xb, w1b, b1, w2b, b2, w3b, b3)

    return out.reshape(-1)[:N]  # squeeze(dim=1)


def init_params(key, dim):
    """Deterministic synthetic parameters with PyTorch Linear shapes.
    fc_1/fc_2 stored transposed ([in, out]); fc_3 kept in PyTorch's (1, 10)."""
    k1, k2, k3, k4, k5, k6 = jax.random.split(key, 6)

    def uni(k, shape, fan_in):
        bound = 1.0 / jnp.sqrt(fan_in)
        return jax.random.uniform(k, shape, jnp.float32, -bound, bound)

    w1 = uni(k1, (dim, 80), dim)
    b1 = uni(k2, (1, 80), dim)
    w2 = uni(k3, (80, 10), 80)
    b2 = uni(k4, (1, 10), 80)
    w3 = uni(k5, (1, 10), 10)    # PyTorch fc_3.weight layout (out=1, in=10)
    b3 = uni(k6, (1, 1), 10)
    return (w1, b1, w2, b2, w3, b3)


def mlp_reference(x, params):
    """Pure-JAX reference mirroring the kernel's bf16-in / f32-accumulate math."""
    w1, b1, w2, b2, w3, b3 = params
    bf = jnp.bfloat16
    h1 = jnp.maximum(
        jnp.dot(x.astype(bf), w1.astype(bf), preferred_element_type=jnp.float32) + b1,
        0.0)
    h2 = jnp.maximum(
        jnp.dot(h1.astype(bf), w2.astype(bf), preferred_element_type=jnp.float32) + b2,
        0.0)
    out = jnp.dot(h2.astype(bf), w3.astype(bf).T,
                  preferred_element_type=jnp.float32) + b3
    return out[:, 0]


if __name__ == "__main__":
    key = jax.random.PRNGKey(0)
    kx, kp = jax.random.split(key)

    dim = 32
    params = init_params(kp, dim)

    # One nicely-tiled size and one ragged size (exercises padding + slicing).
    for N in (1024, 200):
        x = jax.random.normal(jax.random.fold_in(kx, N), (N, dim), jnp.float32)

        out = jax.block_until_ready(mlp_forward(x, params))
        ref = mlp_reference(x, params)

        assert out.shape == (N,), out.shape
        assert jnp.allclose(out, ref, atol=1e-3, rtol=1e-3), (
            float(jnp.max(jnp.abs(out - ref))))

    print("KERNEL_OK")
</pallas_src>

<mosaic_0001>
module attributes {stable_mosaic.version = 11 : i64} {
  func.func @mlp_kernel(%arg0: i32, %arg1: memref<256x32xbf16, #tpu.memory_space<vmem>>, %arg2: memref<32x80xbf16, #tpu.memory_space<vmem>>, %arg3: memref<1x80xf32, #tpu.memory_space<vmem>>, %arg4: memref<80x10xbf16, #tpu.memory_space<vmem>>, %arg5: memref<1x10xf32, #tpu.memory_space<vmem>>, %arg6: memref<1x10xbf16, #tpu.memory_space<vmem>>, %arg7: memref<1x1xf32, #tpu.memory_space<vmem>>, %arg8: memref<1x1x256xf32, #tpu.memory_space<vmem>>) attributes {dimension_semantics = [#tpu.dimension_semantics<parallel>], iteration_bounds = array<i64: 4>, scalar_prefetch = 0 : i64, scratch_operands = 0 : i64, tpu.core_type = #tpu.core_type<tc>, window_params = [{transform_indices = @transform_0, window_bounds = array<i64: 256, 32>}, {pipeline_mode = #tpu.pipeline_mode<synchronous>, transform_indices = @transform_1, window_bounds = array<i64: 32, 80>}, {pipeline_mode = #tpu.pipeline_mode<synchronous>, transform_indices = @transform_2, window_bounds = array<i64: 1, 80>}, {pipeline_mode = #tpu.pipeline_mode<synchronous>, transform_indices = @transform_3, window_bounds = array<i64: 80, 10>}, {pipeline_mode = #tpu.pipeline_mode<synchronous>, transform_indices = @transform_4, window_bounds = array<i64: 1, 10>}, {pipeline_mode = #tpu.pipeline_mode<synchronous>, transform_indices = @transform_5, window_bounds = array<i64: 1, 10>}, {pipeline_mode = #tpu.pipeline_mode<synchronous>, transform_indices = @transform_6, window_bounds = array<i64: 1, 1>}, {transform_indices = @transform_7, window_bounds = array<i64: 1, 1, 256>}]} {
    %c0 = arith.constant 0 : index
    %c0_0 = arith.constant 0 : index
    %0 = vector.load %arg1[%c0, %c0_0] : memref<256x32xbf16, #tpu.memory_space<vmem>>, vector<256x32xbf16>
    %c0_1 = arith.constant 0 : index
    %c0_2 = arith.constant 0 : index
    %1 = vector.load %arg2[%c0_1, %c0_2] : memref<32x80xbf16, #tpu.memory_space<vmem>>, vector<32x80xbf16>
    %cst = arith.constant dense<0.000000e+00> : vector<256x80xf32>
    %2 = tpu.matmul %0, %1, %cst {dimension_numbers = #tpu.dot_dimension_numbers<[1], [0], [0], [1], [0, 0, 1, 1], [], []>} : vector<256x32xbf16>, vector<32x80xbf16>, vector<256x80xf32> -> vector<256x80xf32>
    %c0_3 = arith.constant 0 : index
    %c0_4 = arith.constant 0 : index
    %3 = vector.load %arg3[%c0_3, %c0_4] : memref<1x80xf32, #tpu.memory_space<vmem>>, vector<1x80xf32>
    %4 = vector.broadcast %3 : vector<1x80xf32> to vector<256x80xf32>
    %5 = arith.addf %2, %4 : vector<256x80xf32>
    %cst_5 = arith.constant 0.000000e+00 : f32
    %6 = vector.broadcast %cst_5 : f32 to vector<256x80xf32>
    %7 = arith.maximumf %5, %6 : vector<256x80xf32>
    %8 = arith.truncf %7 : vector<256x80xf32> to vector<256x80xbf16>
    %c0_6 = arith.constant 0 : index
    %c0_7 = arith.constant 0 : index
    %9 = vector.load %arg4[%c0_6, %c0_7] : memref<80x10xbf16, #tpu.memory_space<vmem>>, vector<80x10xbf16>
    %cst_8 = arith.constant dense<0.000000e+00> : vector<256x10xf32>
    %10 = tpu.matmul %8, %9, %cst_8 {dimension_numbers = #tpu.dot_dimension_numbers<[1], [0], [0], [1], [0, 0, 1, 1], [], []>} : vector<256x80xbf16>, vector<80x10xbf16>, vector<256x10xf32> -> vector<256x10xf32>
    %c0_9 = arith.constant 0 : index
    %c0_10 = arith.constant 0 : index
    %11 = vector.load %arg5[%c0_9, %c0_10] : memref<1x10xf32, #tpu.memory_space<vmem>>, vector<1x10xf32>
    %12 = vector.broadcast %11 : vector<1x10xf32> to vector<256x10xf32>
    %13 = arith.addf %10, %12 : vector<256x10xf32>
    %cst_11 = arith.constant 0.000000e+00 : f32
    %14 = vector.broadcast %cst_11 : f32 to vector<256x10xf32>
    %15 = arith.maximumf %13, %14 : vector<256x10xf32>
    %c0_12 = arith.constant 0 : index
    %c0_13 = arith.constant 0 : index
    %16 = vector.load %arg6[%c0_12, %c0_13] : memref<1x10xbf16, #tpu.memory_space<vmem>>, vector<1x10xbf16>
    %17 = arith.truncf %15 : vector<256x10xf32> to vector<256x10xbf16>
    %cst_14 = arith.constant dense<0.000000e+00> : vector<1x256xf32>
    %18 = tpu.matmul %16, %17, %cst_14 {dimension_numbers = #tpu.dot_dimension_numbers<[1], [1], [0], [0], [0, 0, 1, 0], [], []>} : vector<1x10xbf16>, vector<256x10xbf16>, vector<1x256xf32> -> vector<1x256xf32>
    %c0_15 = arith.constant 0 : index
    %c0_16 = arith.constant 0 : index
    %19 = vector.load %arg7[%c0_15, %c0_16] : memref<1x1xf32, #tpu.memory_space<vmem>>, vector<1x1xf32>
    %20 = vector.broadcast %19 : vector<1x1xf32> to vector<1x256xf32>
    %21 = arith.addf %18, %20 : vector<1x256xf32>
    %22 = vector.shape_cast %21 : vector<1x256xf32> to vector<1x1x256xf32>
    %c0_17 = arith.constant 0 : index
    %c0_18 = arith.constant 0 : index
    %c0_19 = arith.constant 0 : index
    %23 = vector.load %arg8[%c0_17, %c0_18, %c0_19] : memref<1x1x256xf32, #tpu.memory_space<vmem>>, vector<1x1x256xf32>
    tpu.vector_store %arg8[%c0_17, %c0_18, %c0_19], %22 {strides = array<i32>} : memref<1x1x256xf32, #tpu.memory_space<vmem>>, vector<1x1x256xf32>,
    return
  }
  func.func @transform_0(%arg0: i32) -> (i32, i32) {
    %c0_i32 = arith.constant 0 : i32
    %c0_i32_0 = arith.constant 0 : i32
    return %arg0, %c0_i32 : i32, i32
  }
  func.func @transform_1(%arg0: i32) -> (i32, i32) {
    %c0_i32 = arith.constant 0 : i32
    %c0_i32_0 = arith.constant 0 : i32
    %c0_i32_1 = arith.constant 0 : i32
    return %c0_i32, %c0_i32_0 : i32, i32
  }
  func.func @transform_2(%arg0: i32) -> (i32, i32) {
    %c0_i32 = arith.constant 0 : i32
    %c0_i32_0 = arith.constant 0 : i32
    %c0_i32_1 = arith.constant 0 : i32
    return %c0_i32, %c0_i32_0 : i32, i32
  }
  func.func @transform_3(%arg0: i32) -> (i32, i32) {
    %c0_i32 = arith.constant 0 : i32
    %c0_i32_0 = arith.constant 0 : i32
    %c0_i32_1 = arith.constant 0 : i32
    return %c0_i32, %c0_i32_0 : i32, i32
  }
  func.func @transform_4(%arg0: i32) -> (i32, i32) {
    %c0_i32 = arith.constant 0 : i32
    %c0_i32_0 = arith.constant 0 : i32
    %c0_i32_1 = arith.constant 0 : i32
    return %c0_i32, %c0_i32_0 : i32, i32
  }
  func.func @transform_5(%arg0: i32) -> (i32, i32) {
    %c0_i32 = arith.constant 0 : i32
    %c0_i32_0 = arith.constant 0 : i32
    %c0_i32_1 = arith.constant 0 : i32
    return %c0_i32, %c0_i32_0 : i32, i32
  }
  func.func @transform_6(%arg0: i32) -> (i32, i32) {
    %c0_i32 = arith.constant 0 : i32
    %c0_i32_0 = arith.constant 0 : i32
    %c0_i32_1 = arith.constant 0 : i32
    return %c0_i32, %c0_i32_0 : i32, i32
  }
  func.func @transform_7(%arg0: i32) -> (i32, i32, i32) {
    %c0_i32 = arith.constant 0 : i32
    %c0_i32_0 = arith.constant 0 : i32
    %c0_i32_1 = arith.constant 0 : i32
    return %arg0, %c0_i32, %c0_i32_0 : i32, i32, i32
  }
}

</mosaic_0001>

<llo_original>
// kernel: tpu_custom_call.1
$region0: #{tpu_custom_call.1}
  #allocation0 [shape = 'u32[]', space=smem, size = 0x4, offset = 0x4, fixed_abs, tag = 'smem constant byte address 0x4 - core index']
  #allocation1 [shape = 'u32[144,128]{1,0:T(1,128)}', space=vmem, size = 0x12000, scoped, tag = 'internal scratch']
  #allocation2 [shape = 'f32[1,1]{1,0:T(1,128)S(1)}', space=vmem, size = 0x200, scoped, tag = 'scoped memory for tpu_custom_call.1']
  %s0 = inlined_call_operand.vmem [shape: bf16[1024,32], index: 0, kind: input, shape index: {}]
  %s1 = inlined_call_operand.vmem [shape: bf16[32,80], index: 1, kind: input, shape index: {}]
  %s2 = inlined_call_operand.vmem [shape: f32[1,80], index: 2, kind: input, shape index: {}]
  %s3 = inlined_call_operand.vmem [shape: bf16[80,10], index: 3, kind: input, shape index: {}]
  %s4 = inlined_call_operand.vmem [shape: f32[1,10], index: 4, kind: input, shape index: {}]
  %s5 = inlined_call_operand.vmem [shape: bf16[1,10], index: 5, kind: input, shape index: {}]
  %s6 = inlined_call_operand.<no memory space> [shape: f32[1,1], index: 6, kind: input, shape index: {}]
  %s7 = inlined_call_operand.hbm [shape: f32[4,1,256], index: 7, kind: output, shape index: {}]
  %s8 = sld [smem:[#allocation0]]
  $region61: #{tpu_custom_call.1} parent=0
    _
  %s10 = ssub.s32 1, %s8
  %s11 = scalar_select 0, %s10, %s8
  %v12 = vstv %s6
  %13 = vst [vmem:[#allocation2] sm:$0x1] %v12
  $region1: #{tpu_custom_call.1} parent=0
    #allocation3 [shape = 'u8[2048]{0}', space=vmem, size = 0x800, scoped, tag = 'output window, operand 0']
    #allocation4 [shape = 's32[2]{0}', space=sflag, size = 0x8, scoped, tag = 'scoped memory for tpu_custom_call.1']
    %14 = vsyncpa [#allocation4], 0
    %s15 = scalar_lea.sflag [#allocation4], 1
    %16 = vsyncpa %s15, 0
    loop: start=0, step=1, limit=6
    $region2: #{tpu_custom_call.1} parent=1 // loop_pre_header
      _
    $region3: #{tpu_custom_call.1} parent=1 // loop_header
      %s18 = sphi 0, %s22
      %p19 = scmp.ge.s32.totalorder %s18, 6
      %s28 = sphi 0, %s30
      %s31 = sphi 0, %s28
      %s32 = sphi 0, %s31
      %s48 = sphi 0, %s32
      %s52 = sphi 0, %s52
      %s54 = sphi 0, %s52
      %s55 = sphi 0, %s54
      %s69 = sphi 0, %s55
      %s73 = sphi 0, %s73
      %s75 = sphi 0, %s73
      %s76 = sphi 0, %s75
      %s90 = sphi 0, %s76
      %s94 = sphi 0, %s94
      %s96 = sphi 0, %s94
      %s97 = sphi 0, %s96
      %s111 = sphi 0, %s97
      %s115 = sphi 0, %s115
      %s117 = sphi 0, %s115
      %s118 = sphi 0, %s117
      %s132 = sphi 0, %s118
      %s136 = sphi 0, %s136
      %s138 = sphi 0, %s136
      %s139 = sphi 0, %s138
      %s153 = sphi 0, %s139
      %s157 = sphi 0, %s157
      %s159 = sphi 0, %s157
      %s160 = sphi 0, %s159
      %s174 = sphi 0, %s160
      %s180 = sphi 0, %s182
      %s183 = sphi 0, %s180
      %s184 = sphi 0, %s183
      %s200 = sphi 0, %s184
    $region4: #{tpu_custom_call.1} parent=1 // loop_header_branch
      %21 = sbr.rel (%p19) target = $region8
    $region5: #{tpu_custom_call.1} parent=1 // loop_body
      %s23 = ssub.s32 %s18, 1
      %s24 = ssub.s32 %s18, 2
      %s25 = sadd.s32 %s18, 1
      %s26 = ssub.s32 %s18, %s25
      %p27 = scmp.eq.s32.totalorder %s26, 0
      %s29 = sadd.s32 %s28, 1
      %s30 = scalar_select %p27, %s28, %s29
      %p33 = pneg %p27
      %p34 = scmp.eq.s32.totalorder %s18, 3
      %p35 = por %p33, %p34
      %p36 = scmp.ne.s32.totalorder %s28, %s31
      %p37 = scmp.eq.s32.totalorder %s18, 0
      %p38 = por %p36, %p37
      %p39 = scmp.ne.s32.totalorder %s28, %s31
      %p40 = scmp.eq.s32.totalorder %s23, 3
      %p41 = por %p39, %p40
      %p42 = scmp.ne.s32.totalorder %s31, %s32
      %p43 = scmp.eq.s32.totalorder %s23, 0
      %p44 = por %p42, %p43
      %p45 = scmp.ne.s32.totalorder %s31, %s32
      %p46 = scmp.eq.s32.totalorder %s24, 3
      %p47 = por %p45, %p46
      %p49 = scmp.ne.s32.totalorder %s32, %s48
      %p50 = scmp.eq.s32.totalorder %s24, 0
      %p51 = por %p49, %p50
      %s53 = sadd.s32 %s52, 1
      %p56 = scmp.eq.s32.totalorder %s18, 3
      %p57 = scmp.ne.s32.totalorder %s52, %s54
      %p58 = scmp.eq.s32.totalorder %s18, 0
      %p59 = por %p57, %p58
      %p60 = scmp.ne.s32.totalorder %s52, %s54
      %p61 = scmp.eq.s32.totalorder %s23, 3
      %p62 = por %p60, %p61
      %p63 = scmp.ne.s32.totalorder %s54, %s55
      %p64 = scmp.eq.s32.totalorder %s23, 0
      %p65 = por %p63, %p64
      %p66 = scmp.ne.s32.totalorder %s54, %s55
      %p67 = scmp.eq.s32.totalorder %s24, 3
      %p68 = por %p66, %p67
      %p70 = scmp.ne.s32.totalorder %s55, %s69
      %p71 = scmp.eq.s32.totalorder %s24, 0
      %p72 = por %p70, %p71
      %s74 = sadd.s32 %s73, 1
      %p77 = scmp.eq.s32.totalorder %s18, 3
      %p78 = scmp.ne.s32.totalorder %s73, %s75
      %p79 = scmp.eq.s32.totalorder %s18, 0
      %p80 = por %p78, %p79
      %p81 = scmp.ne.s32.totalorder %s73, %s75
      %p82 = scmp.eq.s32.totalorder %s23, 3
      %p83 = por %p81, %p82
      %p84 = scmp.ne.s32.totalorder %s75, %s76
      %p85 = scmp.eq.s32.totalorder %s23, 0
      %p86 = por %p84, %p85
      %p87 = scmp.ne.s32.totalorder %s75, %s76
      %p88 = scmp.eq.s32.totalorder %s24, 3
      %p89 = por %p87, %p88
      %p91 = scmp.ne.s32.totalorder %s76, %s90
      %p92 = scmp.eq.s32.totalorder %s24, 0
      %p93 = por %p91, %p92
      %s95 = sadd.s32 %s94, 1
      %p98 = scmp.eq.s32.totalorder %s18, 3
      %p99 = scmp.ne.s32.totalorder %s94, %s96
      %p100 = scmp.eq.s32.totalorder %s18, 0
      %p101 = por %p99, %p100
      %p102 = scmp.ne.s32.totalorder %s94, %s96
      %p103 = scmp.eq.s32.totalorder %s23, 3
      %p104 = por %p102, %p103
      %p105 = scmp.ne.s32.totalorder %s96, %s97
      %p106 = scmp.eq.s32.totalorder %s23, 0
      %p107 = por %p105, %p106
      %p108 = scmp.ne.s32.totalorder %s96, %s97
      %p109 = scmp.eq.s32.totalorder %s24, 3
      %p110 = por %p108, %p109
      %p112 = scmp.ne.s32.totalorder %s97, %s111
      %p113 = scmp.eq.s32.totalorder %s24, 0
      %p114 = por %p112, %p113
      %s116 = sadd.s32 %s115, 1
      %p119 = scmp.eq.s32.totalorder %s18, 3
      %p120 = scmp.ne.s32.totalorder %s115, %s117
      %p121 = scmp.eq.s32.totalorder %s18, 0
      %p122 = por %p120, %p121
      %p123 = scmp.ne.s32.totalorder %s115, %s117
      %p124 = scmp.eq.s32.totalorder %s23, 3
      %p125 = por %p123, %p124
      %p126 = scmp.ne.s32.totalorder %s117, %s118
      %p127 = scmp.eq.s32.totalorder %s23, 0
      %p128 = por %p126, %p127
      %p129 = scmp.ne.s32.totalorder %s117, %s118
      %p130 = scmp.eq.s32.totalorder %s24, 3
      %p131 = por %p129, %p130
      %p133 = scmp.ne.s32.totalorder %s118, %s132
      %p134 = scmp.eq.s32.totalorder %s24, 0
      %p135 = por %p133, %p134
      %s137 = sadd.s32 %s136, 1
      %p140 = scmp.eq.s32.totalorder %s18, 3
      %p141 = scmp.ne.s32.totalorder %s136, %s138
      %p142 = scmp.eq.s32.totalorder %s18, 0
      %p143 = por %p141, %p142
      %p144 = scmp.ne.s32.totalorder %s136, %s138
      %p145 = scmp.eq.s32.totalorder %s23, 3
      %p146 = por %p144, %p145
      %p147 = scmp.ne.s32.totalorder %s138, %s139
      %p148 = scmp.eq.s32.totalorder %s23, 0
      %p149 = por %p147, %p148
      %p150 = scmp.ne.s32.totalorder %s138, %s139
      %p151 = scmp.eq.s32.totalorder %s24, 3
      %p152 = por %p150, %p151
      %p154 = scmp.ne.s32.totalorder %s139, %s153
      %p155 = scmp.eq.s32.totalorder %s24, 0
      %p156 = por %p154, %p155
      %s158 = sadd.s32 %s157, 1
      %p161 = scmp.eq.s32.totalorder %s18, 3
      %p162 = scmp.ne.s32.totalorder %s157, %s159
      %p163 = scmp.eq.s32.totalorder %s18, 0
      %p164 = por %p162, %p163
      %p165 = scmp.ne.s32.totalorder %s157, %s159
      %p166 = scmp.eq.s32.totalorder %s23, 3
      %p167 = por %p165, %p166
      %p168 = scmp.ne.s32.totalorder %s159, %s160
      %p169 = scmp.eq.s32.totalorder %s23, 0
      %p170 = por %p168, %p169
      %p171 = scmp.ne.s32.totalorder %s159, %s160
      %p172 = scmp.eq.s32.totalorder %s24, 3
      %p173 = por %p171, %p172
      %p175 = scmp.ne.s32.totalorder %s160, %s174
      %p176 = scmp.eq.s32.totalorder %s24, 0
      %p177 = por %p175, %p176
      %s178 = ssub.s32 %s18, %s25
      %p179 = scmp.eq.s32.totalorder %s178, 0
      %s181 = sadd.s32 %s180, 1
      %s182 = scalar_select %p179, %s180, %s181
      %p185 = pneg %p179
      %p186 = scmp.eq.s32.totalorder %s18, 3
      %p187 = por %p185, %p186
      %p188 = scmp.ne.s32.totalorder %s180, %s183
      %p189 = scmp.eq.s32.totalorder %s18, 0
      %p190 = por %p188, %p189
      %p191 = scmp.ne.s32.totalorder %s180, %s183
      %p192 = scmp.eq.s32.totalorder %s23, 3
      %p193 = por %p191, %p192
      %p194 = scmp.ne.s32.totalorder %s183, %s184
      %p195 = scmp.eq.s32.totalorder %s23, 0
      %p196 = por %p194, %p195
      %p197 = scmp.ne.s32.totalorder %s183, %s184
      %p198 = scmp.eq.s32.totalorder %s24, 3
      %p199 = por %p197, %p198
      %p201 = scmp.ne.s32.totalorder %s184, %s200
      %p202 = scmp.eq.s32.totalorder %s24, 0
      %p203 = por %p201, %p202
      %p204 = scmp.le.s32.totalorder 1, %s18
      %p205 = scmp.lt.s32.totalorder %s18, 5
      %p206 = pnand %p204, %p205
      %p207 = pneg %p206
      // Predicated region
      $region9: #{tpu_custom_call.1} parent=5 // pred_check
        _
      $region10: #{tpu_custom_call.1} parent=5 // pred_check_branch
        %209 = sbr.rel (%p206) target = $region12
      $region11: #{tpu_custom_call.1} parent=5 // pred_region
        %s210 = ssub.s32 %s18, 1
        // Predicated region
        $region13: #{tpu_custom_call.1} parent=11 // pred_check
          %p211 = pneg %p65
        $region14: #{tpu_custom_call.1} parent=11 // pred_check_branch
          %213 = sbr.rel (%p211) target = $region16
        $region15: #{tpu_custom_call.1} parent=11 // pred_region
          _
        $region16: #{tpu_custom_call.1} parent=11 // pred_fallthru
          _
        // Predicated region
        $region17: #{tpu_custom_call.1} parent=11 // pred_check
          %p214 = pneg %p86
        $region18: #{tpu_custom_call.1} parent=11 // pred_check_branch
          %216 = sbr.rel (%p214) target = $region20
        $region19: #{tpu_custom_call.1} parent=11 // pred_region
          _
        $region20: #{tpu_custom_call.1} parent=11 // pred_fallthru
          _
        // Predicated region
        $region21: #{tpu_custom_call.1} parent=11 // pred_check
          %p217 = pneg %p107
        $region22: #{tpu_custom_call.1} parent=11 // pred_check_branch
          %219 = sbr.rel (%p217) target = $region24
        $region23: #{tpu_custom_call.1} parent=11 // pred_region
          _
        $region24: #{tpu_custom_call.1} parent=11 // pred_fallthru
          _
        // Predicated region
        $region25: #{tpu_custom_call.1} parent=11 // pred_check
          %p220 = pneg %p128
        $region26: #{tpu_custom_call.1} parent=11 // pred_check_branch
          %222 = sbr.rel (%p220) target = $region28
        $region27: #{tpu_custom_call.1} parent=11 // pred_region
          _
        $region28: #{tpu_custom_call.1} parent=11 // pred_fallthru
          _
        // Predicated region
        $region29: #{tpu_custom_call.1} parent=11 // pred_check
          %p223 = pneg %p149
        $region30: #{tpu_custom_call.1} parent=11 // pred_check_branch
          %225 = sbr.rel (%p223) target = $region32
        $region31: #{tpu_custom_call.1} parent=11 // pred_region
          _
        $region32: #{tpu_custom_call.1} parent=11 // pred_fallthru
          _
        // Predicated region
        $region33: #{tpu_custom_call.1} parent=11 // pred_check
          %p226 = pneg %p170
        $region34: #{tpu_custom_call.1} parent=11 // pred_check_branch
          %228 = sbr.rel (%p226) target = $region36
        $region35: #{tpu_custom_call.1} parent=11 // pred_region
          _
        $region36: #{tpu_custom_call.1} parent=11 // pred_fallthru
          _
      $region12: #{tpu_custom_call.1} parent=5 // pred_fallthru
        _
      %p229 = scmp.lt.s32.totalorder %s18, 4
      // Predicated region
      $region37: #{tpu_custom_call.1} parent=5 // pred_check
        %p230 = pneg %p229
      $region38: #{tpu_custom_call.1} parent=5 // pred_check_branch
        %232 = sbr.rel (%p230) target = $region40
      $region39: #{tpu_custom_call.1} parent=5 // pred_region
        // Predicated region
        $region41: #{tpu_custom_call.1} parent=39 // pred_check
          %p233 = pneg %p38
        $region42: #{tpu_custom_call.1} parent=39 // pred_check_branch
          %235 = sbr.rel (%p233) target = $region44
        $region43: #{tpu_custom_call.1} parent=39 // pred_region
          %s236 = smul.u32 32, %s18
          %p237 = scmp.lt.s32.totalorder %s236, 127
          %s238 = scalar_select %p237, %s236, 127
          %s239 = smul.addr %s238, 4
          %s240 = scalar_lea.vmem %s0, %s239
          %s241 = smul.u32 32, %s18
        $region44: #{tpu_custom_call.1} parent=39 // pred_fallthru
          _
      $region40: #{tpu_custom_call.1} parent=5 // pred_fallthru
        _
      %p242 = scmp.le.s32.totalorder 1, %s18
      %p243 = scmp.lt.s32.totalorder %s18, 5
      %p244 = pnand %p242, %p243
      %p245 = pneg %p244
      // Predicated region
      $region45: #{tpu_custom_call.1} parent=5 // pred_check
        _
      $region46: #{tpu_custom_call.1} parent=5 // pred_check_branch
        %247 = sbr.rel (%p244) target = $region48
      $region47: #{tpu_custom_call.1} parent=5 // pred_region
        %s248 = ssub.s32 %s18, 1
        %s249 = smul.u32 32, %s23
        %p250 = scmp.lt.s32.totalorder %s249, 127
        %s251 = scalar_select %p250, %s249, 127
        %s252 = smul.addr %s251, 4
        %s253 = scalar_lea.vmem %s0, %s252
        %p254 = pneg %p44
        %p255 = pneg %p41
        %p256 = pneg %p65
        %p257 = pneg %p62
        %p258 = pneg %p86
        %p259 = pneg %p83
        %p260 = pneg %p107
        %p261 = pneg %p104
        %p262 = pneg %p128
        %p263 = pneg %p125
        %p264 = pneg %p149
        %p265 = pneg %p146
        %p266 = pneg %p170
        %p267 = pneg %p167
        %p268 = pneg %p196
        %p269 = pneg %p193
        %s270 = sand.u32 %s183, 1
        %s271 = scalar_lea.sflag [#allocation4], %s270
        %s272 = sand.u32 %s183, 1
        %s273 = smul.addr %s272, 2
        %s274 = scalar_lea.vmem [#allocation3], %s273
        %s275 = smul.u32 32, %s23
        %p276 = scmp.lt.s32.totalorder %s275, 127
        %s277 = scalar_select %p276, %s275, 127
        %s278 = smul.addr %s277, 4
        %s279 = scalar_lea.vmem %s0, %s278
        %s280 = smul.u32 32, %s23
        %v282 = vld [vmem:[%s279] sm:$0xf]
        %v283 = vld [vmem:[%s279 + $0x4] sm:$0xf]
        %v284 = vld [vmem:[%s279 + $0x8] sm:$0xf]
        %v285 = vld [vmem:[%s279 + $0xc] sm:$0xf]
        %v286 = vld [vmem:[%s279 + $0x10] sm:$0xf]
        %v287 = vld [vmem:[%s279 + $0x14] sm:$0xf]
        %v288 = vld [vmem:[%s279 + $0x18] sm:$0xf]
        %v289 = vld [vmem:[%s279 + $0x1c] sm:$0xf]
        %v290 = vld [vmem:[%s279 + $0x20] sm:$0xf]
        %v291 = vld [vmem:[%s279 + $0x24] sm:$0xf]
        %v292 = vld [vmem:[%s279 + $0x28] sm:$0xf]
        %v293 = vld [vmem:[%s279 + $0x2c] sm:$0xf]
        %v294 = vld [vmem:[%s279 + $0x30] sm:$0xf]
        %v295 = vld [vmem:[%s279 + $0x34] sm:$0xf]
        %v296 = vld [vmem:[%s279 + $0x38] sm:$0xf]
        %v297 = vld [vmem:[%s279 + $0x3c] sm:$0xf]
        %v298 = vld [vmem:[%s279 + $0x40] sm:$0xf]
        %v299 = vld [vmem:[%s279 + $0x44] sm:$0xf]
        %v300 = vld [vmem:[%s279 + $0x48] sm:$0xf]
        %v301 = vld [vmem:[%s279 + $0x4c] sm:$0xf]
        %v302 = vld [vmem:[%s279 + $0x50] sm:$0xf]
        %v303 = vld [vmem:[%s279 + $0x54] sm:$0xf]
        %v304 = vld [vmem:[%s279 + $0x58] sm:$0xf]
        %v305 = vld [vmem:[%s279 + $0x5c] sm:$0xf]
        %v306 = vld [vmem:[%s279 + $0x60] sm:$0xf]
        %v307 = vld [vmem:[%s279 + $0x64] sm:$0xf]
        %v308 = vld [vmem:[%s279 + $0x68] sm:$0xf]
        %v309 = vld [vmem:[%s279 + $0x6c] sm:$0xf]
        %v310 = vld [vmem:[%s279 + $0x70] sm:$0xf]
        %v311 = vld [vmem:[%s279 + $0x74] sm:$0xf]
        %v312 = vld [vmem:[%s279 + $0x78] sm:$0xf]
        %v313 = vld [vmem:[%s279 + $0x7c] sm:$0xf]
        %v314 = vld [vmem:[%s1] sm:$0xf]
        %v315 = vld [vmem:[%s1 + $0x4] sm:$0xf]
        %v316 = vld [vmem:[%s1 + $0x8] sm:$0xf]
        %v317 = vld [vmem:[%s1 + $0xc] sm:$0xf]
        %v318 = vld [vmem:[%s2] sm:$0x1]
        %v320 = vlaneseq
        %v321 = vshrl.u32 %v320, 7
        %v322 = vsub.s32 0, %v321
        %v323 = vrot.slane %v318, %v322
        %v357 = vunpack.c.l.b16 %v282
        %v358 = vunpack.c.l.b16 %v283
        %v359 = vunpack.c.l.b16 %v284
        %v360 = vunpack.c.l.b16 %v285
        %v361 = vunpack.c.l.b16 %v286
        %v362 = vunpack.c.l.b16 %v287
        %v363 = vunpack.c.l.b16 %v288
        %v364 = vunpack.c.l.b16 %v289
        %v365 = vunpack.c.l.b16 %v290
        %v366 = vunpack.c.l.b16 %v291
        %v367 = vunpack.c.l.b16 %v292
        %v368 = vunpack.c.l.b16 %v293
        %v369 = vunpack.c.l.b16 %v294
        %v370 = vunpack.c.l.b16 %v295
        %v371 = vunpack.c.l.b16 %v296
        %v372 = vunpack.c.l.b16 %v297
        %v373 = vunpack.c.l.b16 %v298
        %v374 = vunpack.c.l.b16 %v299
        %v375 = vunpack.c.l.b16 %v300
        %v376 = vunpack.c.l.b16 %v301
        %v377 = vunpack.c.l.b16 %v302
        %v378 = vunpack.c.l.b16 %v303
        %v379 = vunpack.c.l.b16 %v304
        %v380 = vunpack.c.l.b16 %v305
        %v381 = vunpack.c.l.b16 %v306
        %v382 = vunpack.c.l.b16 %v307
        %v383 = vunpack.c.l.b16 %v308
        %v384 = vunpack.c.l.b16 %v309
        %v385 = vunpack.c.l.b16 %v310
        %v386 = vunpack.c.l.b16 %v311
        %v387 = vunpack.c.l.b16 %v312
        %v388 = vunpack.c.l.b16 %v313
        %v389 = vpack.c.b16 %v358, %v357
        %v390 = vpack.c.b16 %v360, %v359
        %v391 = vpack.c.b16 %v362, %v361
        %v392 = vpack.c.b16 %v364, %v363
        %v393 = vpack.c.b16 %v366, %v365
        %v394 = vpack.c.b16 %v368, %v367
        %v395 = vpack.c.b16 %v370, %v369
        %v396 = vpack.c.b16 %v372, %v371
        %v397 = vpack.c.b16 %v374, %v373
        %v398 = vpack.c.b16 %v376, %v375
        %v399 = vpack.c.b16 %v378, %v377
        %v400 = vpack.c.b16 %v380, %v379
        %v401 = vpack.c.b16 %v382, %v381
        %v402 = vpack.c.b16 %v384, %v383
        %v403 = vpack.c.b16 %v386, %v385
        %v404 = vpack.c.b16 %v388, %v387
        %v409 = vunpack.c.l.b16 %v314
        %v410 = vunpack.c.l.b16 %v315
        %v411 = vunpack.c.l.b16 %v316
        %v412 = vunpack.c.l.b16 %v317
        %v413 = vpack.c.b16 %v410, %v409
        %v414 = vpack.c.b16 %v412, %v411
        %vm417 = vcmask 261120
        %v419 = vsel %vm417, %v389, 0
        %v422 = vsel %vm417, %v390, 0
        %v425 = vsel %vm417, %v391, 0
        %v428 = vsel %vm417, %v392, 0
        %v431 = vsel %vm417, %v393, 0
        %v434 = vsel %vm417, %v394, 0
        %v437 = vsel %vm417, %v395, 0
        %v440 = vsel %vm417, %v396, 0
        %v443 = vsel %vm417, %v397, 0
        %v446 = vsel %vm417, %v398, 0
        %v449 = vsel %vm417, %v399, 0
        %v452 = vsel %vm417, %v400, 0
        %v455 = vsel %vm417, %v401, 0
        %v458 = vsel %vm417, %v402, 0
        %v461 = vsel %vm417, %v403, 0
        %v464 = vsel %vm417, %v404, 0
        %466 = vmatprep.subr.bf16.mxu0 0
        %467 = vmatpush1.bf16.msra.mxu0 %v413
        %468 = vmatprep.subr.bf16.mxu0 0
        %469 = vmatpush1.bf16.msra.mxu0 %v414
        %470 = vmatprep.subr.bf16.mxu0 0
        %471 = vmatpush1.bf16.msra.mxu0 0
        %472 = vmatprep.subr.bf16.mxu0 0
        %473 = vmatpush1.bf16.msra.mxu0 0
        %474 = vmatprep.subr.bf16.mxu0 0
        %475 = vmatpush1.bf16.msra.mxu0 0
        %476 = vmatprep.subr.bf16.mxu0 0
        %477 = vmatpush1.bf16.msra.mxu0 0
        %478 = vmatprep.subr.bf16.mxu0 0
        %479 = vmatpush1.bf16.msra.mxu0 0
        %480 = vmatprep.subr.bf16.mxu0 0
        %481 = vmatpush1.bf16.msra.mxu0 0
        %482 = vmatprep.subr.bf16.mxu0 0
        %483 = vmatpush1.bf16.msra.mxu0 0
        %484 = vmatprep.subr.bf16.mxu0 0
        %485 = vmatpush1.bf16.msra.mxu0 0
        %486 = vmatprep.subr.bf16.mxu0 0
        %487 = vmatpush1.bf16.msra.mxu0 0
        %488 = vmatprep.subr.bf16.mxu0 0
        %489 = vmatpush1.bf16.msra.mxu0 0
        %490 = vmatprep.subr.bf16.mxu0 0
        %491 = vmatpush1.bf16.msra.mxu0 0
        %492 = vmatprep.subr.bf16.mxu0 0
        %493 = vmatpush1.bf16.msra.mxu0 0
        %494 = vmatprep.subr.bf16.mxu0 0
        %495 = vmatpush1.bf16.msra.mxu0 0
        %496 = vmatprep.subr.bf16.mxu0 0
        %497 = vmatpush1.bf16.msra.mxu0 0
        %498 = vmatprep.mubr.bf16.mxu0 0
        %499 = vmatmul.mubr.bf16.gmra.mrb[0].mxu0 %v419
        %v500 = vpop.f32.mrb[0].mxu0
        %v501 = vadd.f32 %v323, %v500
        %v502 = vpop.f32.mrb[0].mxu0
        %v503 = vpop.f32.mrb[0].mxu0
        %v504 = vadd.f32 %v323, %v503
        %v505 = vpop.f32.mrb[0].mxu0
        %506 = vmatprep.mubr.bf16.mxu0 0
        %507 = vmatmul.mubr.bf16.gmra.mrb[0].mxu0 %v422
        %v508 = vpop.f32.mrb[0].mxu0
        %v509 = vadd.f32 %v323, %v508
        %v510 = vpop.f32.mrb[0].mxu0
        %v511 = vpop.f32.mrb[0].mxu0
        %v512 = vadd.f32 %v323, %v511
        %v513 = vpop.f32.mrb[0].mxu0
        %514 = vmatprep.mubr.bf16.mxu0 0
        %515 = vmatmul.mubr.bf16.gmra.mrb[0].mxu0 %v425
        %v516 = vpop.f32.mrb[0].mxu0
        %v517 = vadd.f32 %v323, %v516
        %v518 = vpop.f32.mrb[0].mxu0
        %v519 = vpop.f32.mrb[0].mxu0
        %v520 = vadd.f32 %v323, %v519
        %v521 = vpop.f32.mrb[0].mxu0
        %522 = vmatprep.mubr.bf16.mxu0 0
        %523 = vmatmul.mubr.bf16.gmra.mrb[0].mxu0 %v428
        %v524 = vpop.f32.mrb[0].mxu0
        %v525 = vadd.f32 %v323, %v524
        %v526 = vpop.f32.mrb[0].mxu0
        %v527 = vpop.f32.mrb[0].mxu0
        %v528 = vadd.f32 %v323, %v527
        %v529 = vpop.f32.mrb[0].mxu0
        %530 = vmatprep.mubr.bf16.mxu0 0
        %531 = vmatmul.mubr.bf16.gmra.mrb[0].mxu0 %v431
        %v532 = vpop.f32.mrb[0].mxu0
        %v533 = vadd.f32 %v323, %v532
        %v534 = vpop.f32.mrb[0].mxu0
        %v535 = vpop.f32.mrb[0].mxu0
        %v536 = vadd.f32 %v323, %v535
        %v537 = vpop.f32.mrb[0].mxu0
        %538 = vmatprep.mubr.bf16.mxu0 0
        %539 = vmatmul.mubr.bf16.gmra.mrb[0].mxu0 %v434
        %v540 = vpop.f32.mrb[0].mxu0
        %v541 = vadd.f32 %v323, %v540
        %v542 = vpop.f32.mrb[0].mxu0
        %v543 = vpop.f32.mrb[0].mxu0
        %v544 = vadd.f32 %v323, %v543
        %v545 = vpop.f32.mrb[0].mxu0
        %546 = vmatprep.mubr.bf16.mxu0 0
        %547 = vmatmul.mubr.bf16.gmra.mrb[0].mxu0 %v437
        %v548 = vpop.f32.mrb[0].mxu0
        %v549 = vadd.f32 %v323, %v548
        %v550 = vpop.f32.mrb[0].mxu0
        %v551 = vpop.f32.mrb[0].mxu0
        %v552 = vadd.f32 %v323, %v551
        %v553 = vpop.f32.mrb[0].mxu0
        %554 = vmatprep.mubr.bf16.mxu0 0
        %555 = vmatmul.mubr.bf16.gmra.mrb[0].mxu0 %v440
        %v556 = vpop.f32.mrb[0].mxu0
        %v557 = vadd.f32 %v323, %v556
        %v558 = vpop.f32.mrb[0].mxu0
        %v559 = vpop.f32.mrb[0].mxu0
        %v560 = vadd.f32 %v323, %v559
        %v561 = vpop.f32.mrb[0].mxu0
        %562 = vmatprep.mubr.bf16.mxu0 0
        %563 = vmatmul.mubr.bf16.gmra.mrb[0].mxu0 %v443
        %v564 = vpop.f32.mrb[0].mxu0
        %v565 = vadd.f32 %v323, %v564
        %v566 = vpop.f32.mrb[0].mxu0
        %v567 = vpop.f32.mrb[0].mxu0
        %v568 = vadd.f32 %v323, %v567
        %v569 = vpop.f32.mrb[0].mxu0
        %570 = vmatprep.mubr.bf16.mxu0 0
        %571 = vmatmul.mubr.bf16.gmra.mrb[0].mxu0 %v446
        %v572 = vpop.f32.mrb[0].mxu0
        %v573 = vadd.f32 %v323, %v572
        %v574 = vpop.f32.mrb[0].mxu0
        %v575 = vpop.f32.mrb[0].mxu0
        %v576 = vadd.f32 %v323, %v575
        %v577 = vpop.f32.mrb[0].mxu0
        %578 = vmatprep.mubr.bf16.mxu0 0
        %579 = vmatmul.mubr.bf16.gmra.mrb[0].mxu0 %v449
        %v580 = vpop.f32.mrb[0].mxu0
        %v581 = vadd.f32 %v323, %v580
        %v582 = vpop.f32.mrb[0].mxu0
        %v583 = vpop.f32.mrb[0].mxu0
        %v584 = vadd.f32 %v323, %v583
        %v585 = vpop.f32.mrb[0].mxu0
        %586 = vmatprep.mubr.bf16.mxu0 0
        %587 = vmatmul.mubr.bf16.gmra.mrb[0].mxu0 %v452
        %v588 = vpop.f32.mrb[0].mxu0
        %v589 = vadd.f32 %v323, %v588
        %v590 = vpop.f32.mrb[0].mxu0
        %v591 = vpop.f32.mrb[0].mxu0
        %v592 = vadd.f32 %v323, %v591
        %v593 = vpop.f32.mrb[0].mxu0
        %594 = vmatprep.mubr.bf16.mxu0 0
        %595 = vmatmul.mubr.bf16.gmra.mrb[0].mxu0 %v455
        %v596 = vpop.f32.mrb[0].mxu0
        %v597 = vadd.f32 %v323, %v596
        %v598 = vpop.f32.mrb[0].mxu0
        %v599 = vpop.f32.mrb[0].mxu0
        %v600 = vadd.f32 %v323, %v599
        %v601 = vpop.f32.mrb[0].mxu0
        %602 = vmatprep.mubr.bf16.mxu0 0
        %603 = vmatmul.mubr.bf16.gmra.mrb[0].mxu0 %v458
        %v604 = vpop.f32.mrb[0].mxu0
        %v605 = vadd.f32 %v323, %v604
        %v606 = vpop.f32.mrb[0].mxu0
        %v607 = vpop.f32.mrb[0].mxu0
        %v608 = vadd.f32 %v323, %v607
        %v609 = vpop.f32.mrb[0].mxu0
        %610 = vmatprep.mubr.bf16.mxu0 0
        %611 = vmatmul.mubr.bf16.gmra.mrb[0].mxu0 %v461
        %v612 = vpop.f32.mrb[0].mxu0
        %v613 = vadd.f32 %v323, %v612
        %v614 = vpop.f32.mrb[0].mxu0
        %v615 = vpop.f32.mrb[0].mxu0
        %v616 = vadd.f32 %v323, %v615
        %v617 = vpop.f32.mrb[0].mxu0
        %618 = vmatprep.mubr.bf16.mxu0 0
        %619 = vmatmul.mubr.bf16.gmra.mrb[0].mxu0 %v464
        %v620 = vpop.f32.mrb[0].mxu0
        %v621 = vadd.f32 %v323, %v620
        %v622 = vpop.f32.mrb[0].mxu0
        %v623 = vpop.f32.mrb[0].mxu0
        %v624 = vadd.f32 %v323, %v623
        %v625 = vpop.f32.mrb[0].mxu0
        %626 = vdwg.mxu0
        %v627 = vmax.f32 %v501, 0.0
        %v628 = vmax.f32 %v504, 0.0
        %v629 = vmax.f32 %v509, 0.0
        %v630 = vmax.f32 %v512, 0.0
        %v631 = vmax.f32 %v517, 0.0
        %v632 = vmax.f32 %v520, 0.0
        %v633 = vmax.f32 %v525, 0.0
        %v634 = vmax.f32 %v528, 0.0
        %v635 = vmax.f32 %v533, 0.0
        %v636 = vmax.f32 %v536, 0.0
        %v637 = vmax.f32 %v541, 0.0
        %v638 = vmax.f32 %v544, 0.0
        %v639 = vmax.f32 %v549, 0.0
        %v640 = vmax.f32 %v552, 0.0
        %v641 = vmax.f32 %v557, 0.0
        %v642 = vmax.f32 %v560, 0.0
        %v643 = vmax.f32 %v565, 0.0
        %v644 = vmax.f32 %v568, 0.0
        %v645 = vmax.f32 %v573, 0.0
        %v646 = vmax.f32 %v576, 0.0
        %v647 = vmax.f32 %v581, 0.0
        %v648 = vmax.f32 %v584, 0.0
        %v649 = vmax.f32 %v589, 0.0
        %v650 = vmax.f32 %v592, 0.0
        %v651 = vmax.f32 %v597, 0.0
        %v652 = vmax.f32 %v600, 0.0
        %v653 = vmax.f32 %v605, 0.0
        %v654 = vmax.f32 %v608, 0.0
        %v655 = vmax.f32 %v613, 0.0
        %v656 = vmax.f32 %v616, 0.0
        %v657 = vmax.f32 %v621, 0.0
        %v658 = vmax.f32 %v624, 0.0
        %v659 = vpack.c.bf16 %v628, %v627
        %v660 = vpack.c.bf16 %v630, %v629
        %v661 = vpack.c.bf16 %v632, %v631
        %v662 = vpack.c.bf16 %v634, %v633
        %v663 = vpack.c.bf16 %v636, %v635
        %v664 = vpack.c.bf16 %v638, %v637
        %v665 = vpack.c.bf16 %v640, %v639
        %v666 = vpack.c.bf16 %v642, %v641
        %v667 = vpack.c.bf16 %v644, %v643
        %v668 = vpack.c.bf16 %v646, %v645
        %v669 = vpack.c.bf16 %v648, %v647
        %v670 = vpack.c.bf16 %v650, %v649
        %v671 = vpack.c.bf16 %v652, %v651
        %v672 = vpack.c.bf16 %v654, %v653
        %v673 = vpack.c.bf16 %v656, %v655
        %v674 = vpack.c.bf16 %v658, %v657
        %v675 = vld [vmem:[%s3] sm:$0xf]
        %v676 = vld [vmem:[%s3 + $0x4] sm:$0xf]
        %v677 = vld [vmem:[%s3 + $0x8] sm:$0xf]
        %v678 = vld [vmem:[%s3 + $0xc] sm:$0xf]
        %v679 = vld [vmem:[%s3 + $0x10] sm:$0xf]
        %v680 = vld [vmem:[%s3 + $0x14] sm:$0xf]
        %v681 = vld [vmem:[%s3 + $0x18] sm:$0xf]
        %v682 = vld [vmem:[%s3 + $0x1c] sm:$0xf]
        %v683 = vld [vmem:[%s3 + $0x20] sm:$0xf]
        %v684 = vld [vmem:[%s3 + $0x24] sm:$0xf]
        %v685 = vld [vmem:[%s4] sm:$0x1]
        %v687 = vlaneseq
        %v688 = vshrl.u32 %v687, 7
        %v689 = vsub.s32 0, %v688
        %v690 = vrot.slane %v685, %v689
        %v702 = vunpack.c.l.b16 %v675
        %v703 = vunpack.c.l.b16 %v676
        %v704 = vunpack.c.l.b16 %v677
        %v705 = vunpack.c.l.b16 %v678
        %v706 = vunpack.c.l.b16 %v679
        %v707 = vunpack.c.l.b16 %v680
        %v708 = vunpack.c.l.b16 %v681
        %v709 = vunpack.c.l.b16 %v682
        %v710 = vunpack.c.l.b16 %v683
        %v711 = vunpack.c.l.b16 %v684
        %v712 = vpack.c.b16 %v703, %v702
        %v713 = vpack.c.b16 %v705, %v704
        %v714 = vpack.c.b16 %v707, %v706
        %v715 = vpack.c.b16 %v709, %v708
        %v716 = vpack.c.b16 %v711, %v710
        %vm722 = vcmask 654336
        %v724 = vsel %vm722, %v659, 0
        %v727 = vsel %vm722, %v660, 0
        %v730 = vsel %vm722, %v661, 0
        %v733 = vsel %vm722, %v662, 0
        %v736 = vsel %vm722, %v663, 0
        %v739 = vsel %vm722, %v664, 0
        %v742 = vsel %vm722, %v665, 0
        %v745 = vsel %vm722, %v666, 0
        %v748 = vsel %vm722, %v667, 0
        %v751 = vsel %vm722, %v668, 0
        %v754 = vsel %vm722, %v669, 0
        %v757 = vsel %vm722, %v670, 0
        %v760 = vsel %vm722, %v671, 0
        %v763 = vsel %vm722, %v672, 0
        %v766 = vsel %vm722, %v673, 0
        %v769 = vsel %vm722, %v674, 0
        %771 = vmatprep.subr.bf16.mxu0 0
        %772 = vmatpush1.bf16.msra.mxu0 %v712
        %773 = vmatprep.subr.bf16.mxu0 0
        %774 = vmatpush1.bf16.msra.mxu0 %v713
        %775 = vmatprep.subr.bf16.mxu0 0
        %776 = vmatpush1.bf16.msra.mxu0 %v714
        %777 = vmatprep.subr.bf16.mxu0 0
        %778 = vmatpush1.bf16.msra.mxu0 %v715
        %779 = vmatprep.subr.bf16.mxu0 0
        %780 = vmatpush1.bf16.msra.mxu0 %v716
        %781 = vmatprep.subr.bf16.mxu0 0
        %782 = vmatpush1.bf16.msra.mxu0 0
        %783 = vmatprep.subr.bf16.mxu0 0
        %784 = vmatpush1.bf16.msra.mxu0 0
        %785 = vmatprep.subr.bf16.mxu0 0
        %786 = vmatpush1.bf16.msra.mxu0 0
        %787 = vmatprep.subr.bf16.mxu0 0
        %788 = vmatpush1.bf16.msra.mxu0 0
        %789 = vmatprep.subr.bf16.mxu0 0
        %790 = vmatpush1.bf16.msra.mxu0 0
        %791 = vmatprep.subr.bf16.mxu0 0
        %792 = vmatpush1.bf16.msra.mxu0 0
        %793 = vmatprep.subr.bf16.mxu0 0
        %794 = vmatpush1.bf16.msra.mxu0 0
        %795 = vmatprep.subr.bf16.mxu0 0
        %796 = vmatpush1.bf16.msra.mxu0 0
        %797 = vmatprep.subr.bf16.mxu0 0
        %798 = vmatpush1.bf16.msra.mxu0 0
        %799 = vmatprep.subr.bf16.mxu0 0
        %800 = vmatpush1.bf16.msra.mxu0 0
        %801 = vmatprep.subr.bf16.mxu0 0
        %802 = vmatpush1.bf16.msra.mxu0 0
        %803 = vmatprep.mubr.bf16.mxu0 0
        %804 = vmatmul.mubr.bf16.gmra.mrb[0].mxu0 %v724
        %v805 = vpop.f32.mrb[0].mxu0
        %v806 = vadd.f32 %v690, %v805
        %v807 = vpop.f32.mrb[0].mxu0
        %v808 = vpop.f32.mrb[0].mxu0
        %v809 = vadd.f32 %v690, %v808
        %v810 = vpop.f32.mrb[0].mxu0
        %811 = vmatprep.mubr.bf16.mxu0 0
        %812 = vmatmul.mubr.bf16.gmra.mrb[0].mxu0 %v727
        %v813 = vpop.f32.mrb[0].mxu0
        %v814 = vadd.f32 %v690, %v813
        %v815 = vpop.f32.mrb[0].mxu0
        %v816 = vpop.f32.mrb[0].mxu0
        %v817 = vadd.f32 %v690, %v816
        %v818 = vpop.f32.mrb[0].mxu0
        %819 = vmatprep.mubr.bf16.mxu0 0
        %820 = vmatmul.mubr.bf16.gmra.mrb[0].mxu0 %v730
        %v821 = vpop.f32.mrb[0].mxu0
        %v822 = vadd.f32 %v690, %v821
        %v823 = vpop.f32.mrb[0].mxu0
        %v824 = vpop.f32.mrb[0].mxu0
        %v825 = vadd.f32 %v690, %v824
        %v826 = vpop.f32.mrb[0].mxu0
        %827 = vmatprep.mubr.bf16.mxu0 0
        %828 = vmatmul.mubr.bf16.gmra.mrb[0].mxu0 %v733
        %v829 = vpop.f32.mrb[0].mxu0
        %v830 = vadd.f32 %v690, %v829
        %v831 = vpop.f32.mrb[0].mxu0
        %v832 = vpop.f32.mrb[0].mxu0
        %v833 = vadd.f32 %v690, %v832
        %v834 = vpop.f32.mrb[0].mxu0
        %835 = vmatprep.mubr.bf16.mxu0 0
        %836 = vmatmul.mubr.bf16.gmra.mrb[0].mxu0 %v736
        %v837 = vpop.f32.mrb[0].mxu0
        %v838 = vadd.f32 %v690, %v837
        %v839 = vpop.f32.mrb[0].mxu0
        %v840 = vpop.f32.mrb[0].mxu0
        %v841 = vadd.f32 %v690, %v840
        %v842 = vpop.f32.mrb[0].mxu0
        %843 = vmatprep.mubr.bf16.mxu0 0
        %844 = vmatmul.mubr.bf16.gmra.mrb[0].mxu0 %v739
        %v845 = vpop.f32.mrb[0].mxu0
        %v846 = vadd.f32 %v690, %v845
        %v847 = vpop.f32.mrb[0].mxu0
        %v848 = vpop.f32.mrb[0].mxu0
        %v849 = vadd.f32 %v690, %v848
        %v850 = vpop.f32.mrb[0].mxu0
        %851 = vmatprep.mubr.bf16.mxu0 0
        %852 = vmatmul.mubr.bf16.gmra.mrb[0].mxu0 %v742
        %v853 = vpop.f32.mrb[0].mxu0
        %v854 = vadd.f32 %v690, %v853
        %v855 = vpop.f32.mrb[0].mxu0
        %v856 = vpop.f32.mrb[0].mxu0
        %v857 = vadd.f32 %v690, %v856
        %v858 = vpop.f32.mrb[0].mxu0
        %859 = vmatprep.mubr.bf16.mxu0 0
        %860 = vmatmul.mubr.bf16.gmra.mrb[0].mxu0 %v745
        %v861 = vpop.f32.mrb[0].mxu0
        %v862 = vadd.f32 %v690, %v861
        %v863 = vpop.f32.mrb[0].mxu0
        %v864 = vpop.f32.mrb[0].mxu0
        %v865 = vadd.f32 %v690, %v864
        %v866 = vpop.f32.mrb[0].mxu0
        %867 = vmatprep.mubr.bf16.mxu0 0
        %868 = vmatmul.mubr.bf16.gmra.mrb[0].mxu0 %v748
        %v869 = vpop.f32.mrb[0].mxu0
        %v870 = vadd.f32 %v690, %v869
        %v871 = vpop.f32.mrb[0].mxu0
        %v872 = vpop.f32.mrb[0].mxu0
        %v873 = vadd.f32 %v690, %v872
        %v874 = vpop.f32.mrb[0].mxu0
        %875 = vmatprep.mubr.bf16.mxu0 0
        %876 = vmatmul.mubr.bf16.gmra.mrb[0].mxu0 %v751
        %v877 = vpop.f32.mrb[0].mxu0
        %v878 = vadd.f32 %v690, %v877
        %v879 = vpop.f32.mrb[0].mxu0
        %v880 = vpop.f32.mrb[0].mxu0
        %v881 = vadd.f32 %v690, %v880
        %v882 = vpop.f32.mrb[0].mxu0
        %883 = vmatprep.mubr.bf16.mxu0 0
        %884 = vmatmul.mubr.bf16.gmra.mrb[0].mxu0 %v754
        %v885 = vpop.f32.mrb[0].mxu0
        %v886 = vadd.f32 %v690, %v885
        %v887 = vpop.f32.mrb[0].mxu0
        %v888 = vpop.f32.mrb[0].mxu0
        %v889 = vadd.f32 %v690, %v888
        %v890 = vpop.f32.mrb[0].mxu0
        %891 = vmatprep.mubr.bf16.mxu0 0
        %892 = vmatmul.mubr.bf16.gmra.mrb[0].mxu0 %v757
        %v893 = vpop.f32.mrb[0].mxu0
        %v894 = vadd.f32 %v690, %v893
        %v895 = vpop.f32.mrb[0].mxu0
        %v896 = vpop.f32.mrb[0].mxu0
        %v897 = vadd.f32 %v690, %v896
        %v898 = vpop.f32.mrb[0].mxu0
        %899 = vmatprep.mubr.bf16.mxu0 0
        %900 = vmatmul.mubr.bf16.gmra.mrb[0].mxu0 %v760
        %v901 = vpop.f32.mrb[0].mxu0
        %v902 = vadd.f32 %v690, %v901
        %v903 = vpop.f32.mrb[0].mxu0
        %v904 = vpop.f32.mrb[0].mxu0
        %v905 = vadd.f32 %v690, %v904
        %v906 = vpop.f32.mrb[0].mxu0
        %907 = vmatprep.mubr.bf16.mxu0 0
        %908 = vmatmul.mubr.bf16.gmra.mrb[0].mxu0 %v763
        %v909 = vpop.f32.mrb[0].mxu0
        %v910 = vadd.f32 %v690, %v909
        %v911 = vpop.f32.mrb[0].mxu0
        %v912 = vpop.f32.mrb[0].mxu0
        %v913 = vadd.f32 %v690, %v912
        %v914 = vpop.f32.mrb[0].mxu0
        %915 = vmatprep.mubr.bf16.mxu0 0
        %916 = vmatmul.mubr.bf16.gmra.mrb[0].mxu0 %v766
        %v917 = vpop.f32.mrb[0].mxu0
        %v918 = vadd.f32 %v690, %v917
        %v919 = vpop.f32.mrb[0].mxu0
        %v920 = vpop.f32.mrb[0].mxu0
        %v921 = vadd.f32 %v690, %v920
        %v922 = vpop.f32.mrb[0].mxu0
        %923 = vmatprep.mubr.bf16.mxu0 0
        %924 = vmatmul.mubr.bf16.gmra.mrb[0].mxu0 %v769
        %v925 = vpop.f32.mrb[0].mxu0
        %v926 = vadd.f32 %v690, %v925
        %v927 = vpop.f32.mrb[0].mxu0
        %v928 = vpop.f32.mrb[0].mxu0
        %v929 = vadd.f32 %v690, %v928
        %v930 = vpop.f32.mrb[0].mxu0
        %931 = vdwg.mxu0
        %v932 = vmax.f32 %v806, 0.0
        %v933 = vmax.f32 %v809, 0.0
        %v934 = vmax.f32 %v814, 0.0
        %v935 = vmax.f32 %v817, 0.0
        %v936 = vmax.f32 %v822, 0.0
        %v937 = vmax.f32 %v825, 0.0
        %v938 = vmax.f32 %v830, 0.0
        %v939 = vmax.f32 %v833, 0.0
        %v940 = vmax.f32 %v838, 0.0
        %v941 = vmax.f32 %v841, 0.0
        %v942 = vmax.f32 %v846, 0.0
        %v943 = vmax.f32 %v849, 0.0
        %v944 = vmax.f32 %v854, 0.0
        %v945 = vmax.f32 %v857, 0.0
        %v946 = vmax.f32 %v862, 0.0
        %v947 = vmax.f32 %v865, 0.0
        %v948 = vmax.f32 %v870, 0.0
        %v949 = vmax.f32 %v873, 0.0
        %v950 = vmax.f32 %v878, 0.0
        %v951 = vmax.f32 %v881, 0.0
        %v952 = vmax.f32 %v886, 0.0
        %v953 = vmax.f32 %v889, 0.0
        %v954 = vmax.f32 %v894, 0.0
        %v955 = vmax.f32 %v897, 0.0
        %v956 = vmax.f32 %v902, 0.0
        %v957 = vmax.f32 %v905, 0.0
        %v958 = vmax.f32 %v910, 0.0
        %v959 = vmax.f32 %v913, 0.0
        %v960 = vmax.f32 %v918, 0.0
        %v961 = vmax.f32 %v921, 0.0
        %v962 = vmax.f32 %v926, 0.0
        %v963 = vmax.f32 %v929, 0.0
        %v964 = vld [vmem:[%s5] sm:$0x1]
        %v965 = vpack.c.bf16 %v933, %v932
        %v966 = vpack.c.bf16 %v935, %v934
        %v967 = vpack.c.bf16 %v937, %v936
        %v968 = vpack.c.bf16 %v939, %v938
        %v969 = vpack.c.bf16 %v941, %v940
        %v970 = vpack.c.bf16 %v943, %v942
        %v971 = vpack.c.bf16 %v945, %v944
        %v972 = vpack.c.bf16 %v947, %v946
        %v973 = vpack.c.bf16 %v949, %v948
        %v974 = vpack.c.bf16 %v951, %v950
        %v975 = vpack.c.bf16 %v953, %v952
        %v976 = vpack.c.bf16 %v955, %v954
        %v977 = vpack.c.bf16 %v957, %v956
        %v978 = vpack.c.bf16 %v959, %v958
        %v979 = vpack.c.bf16 %v961, %v960
        %v980 = vpack.c.bf16 %v963, %v962
        %v981 = vld [vmem:[#allocation2] sm:$0x1]
        %983 = vset.pattern.permute.xlu0 0
        %984 = vperm.xlu0 %983, %v981
        %v985 = vpop.permute.xlu0 %984
        %v987 = vlaneseq
        %v988 = vshrl.u32 %v987, 7
        %v989 = vsub.s32 0, %v988
        %v990 = vrot.slane %v985, %v989
        %vm991 = vcmask 80896
        %v993 = vsel %vm991, %v964, 0
        %v996 = vsel %vm991, %v965, 0
        %v999 = vsel %vm991, %v966, 0
        %v1002 = vsel %vm991, %v967, 0
        %v1005 = vsel %vm991, %v968, 0
        %v1008 = vsel %vm991, %v969, 0
        %v1011 = vsel %vm991, %v970, 0
        %v1014 = vsel %vm991, %v971, 0
        %v1017 = vsel %vm991, %v972, 0
        %v1020 = vsel %vm991, %v973, 0
        %v1023 = vsel %vm991, %v974, 0
        %v1026 = vsel %vm991, %v975, 0
        %v1029 = vsel %vm991, %v976, 0
        %v1032 = vsel %vm991, %v977, 0
        %v1035 = vsel %vm991, %v978, 0
        %v1038 = vsel %vm991, %v979, 0
        %v1041 = vsel %vm991, %v980, 0
        %1043 = vmatprep.subr.bf16.mxu0 0
        %1044 = vmatpush1.bf16.xpose.msra.mxu0 %v996
        %1045 = vmatprep.subr.bf16.mxu0 0
        %1046 = vmatpush1.bf16.xpose.msra.mxu0 %v999
        %1047 = vmatprep.subr.bf16.mxu0 0
        %1048 = vmatpush1.bf16.xpose.msra.mxu0 %v1002
        %1049 = vmatprep.subr.bf16.mxu0 0
        %1050 = vmatpush1.bf16.xpose.msra.mxu0 %v1005
        %1051 = vmatprep.subr.bf16.mxu0 0
        %1052 = vmatpush1.bf16.xpose.msra.mxu0 %v1008
        %1053 = vmatprep.subr.bf16.mxu0 0
        %1054 = vmatpush1.bf16.xpose.msra.mxu0 %v1011
        %1055 = vmatprep.subr.bf16.mxu0 0
        %1056 = vmatpush1.bf16.xpose.msra.mxu0 %v1014
        %1057 = vmatprep.subr.bf16.mxu0 0
        %1058 = vmatpush1.bf16.xpose.msra.mxu0 %v1017
        %1059 = vmatprep.subr.bf16.mxu0 0
        %1060 = vmatpush1.bf16.xpose.msra.mxu0 %v1020
        %1061 = vmatprep.subr.bf16.mxu0 0
        %1062 = vmatpush1.bf16.xpose.msra.mxu0 %v1023
        %1063 = vmatprep.subr.bf16.mxu0 0
        %1064 = vmatpush1.bf16.xpose.msra.mxu0 %v1026
        %1065 = vmatprep.subr.bf16.mxu0 0
        %1066 = vmatpush1.bf16.xpose.msra.mxu0 %v1029
        %1067 = vmatprep.subr.bf16.mxu0 0
        %1068 = vmatpush1.bf16.xpose.msra.mxu0 %v1032
        %1069 = vmatprep.subr.bf16.mxu0 0
        %1070 = vmatpush1.bf16.xpose.msra.mxu0 %v1035
        %1071 = vmatprep.subr.bf16.mxu0 0
        %1072 = vmatpush1.bf16.xpose.msra.mxu0 %v1038
        %1073 = vmatprep.subr.bf16.mxu0 0
        %1074 = vmatpush1.bf16.xpose.msra.mxu0 %v1041
        %1075 = vmatprep.mubr.bf16.mxu0 0
        %1076 = vmatmul.mubr.bf16.gmra.mrb[0].mxu0 %v993
        %v1077 = vpop.f32.mrb[0].mxu0
        %v1078 = vadd.f32 %v990, %v1077
        %v1079 = vpop.f32.mrb[0].mxu0
        %v1080 = vadd.f32 %v990, %v1079
        %v1081 = vpop.f32.mrb[0].mxu0
        %v1082 = vpop.f32.mrb[0].mxu0
        %1083 = vdwg.mxu0
        %v1086 = vcombine.low %v1078, %v1080
        %v1088 = vunpack.c.l.s4 1966171168
        %v1089 = vunpack.c.0.s8 %v1088
        %v1090 = vlaneseq
        %v1091 = vshrl.u32 %v1090, 7
        %v1092 = vsub.s32 %v1089, %v1091
        %v1093 = vrot.slane %v1086, %v1092
        %v1095 = vunpack.c.l.s4 1966171168
        %v1096 = vunpack.c.0.s8 %v1095
        %v1097 = vlaneseq
        %v1098 = vshrl.u32 %v1097, 7
        %v1099 = vsub.s32 %v1096, %v1098
        %v1100 = vrot.slane %v1093, %v1099
        %v1102 = vlaneseq
        %vm1103 = vcmp.ge.s32.totalorder %v1102, 0
        %vm1104 = vcmp.lt.s32.totalorder %v1102, 256
        %vm1105 = vmand %vm1103, %vm1104
        %1106 = vst.msk [vmem:[%s274] sm:$0x3] %vm1105, %v1100
        %s1107 = sand.u32 %s183, 1
        %s1108 = scalar_lea.sflag [#allocation4], %s1107
        %s1109 = sand.u32 %s183, 1
        %s1110 = smul.addr %s1109, 2
        %s1111 = scalar_lea.vmem [#allocation3], %s1110
        // Predicated region
        $region49: #{tpu_custom_call.1} parent=47 // pred_check
          %p1112 = pneg %p193
        $region50: #{tpu_custom_call.1} parent=47 // pred_check_branch
          %1114 = sbr.rel (%p1112) target = $region52
        $region51: #{tpu_custom_call.1} parent=47 // pred_region
          %s1116 = ssub.s32 32, 32
          %1117 = vsyncadd %s1108, %s1116
          %s1118 = smul.addr %s23, 2
          %s1119 = smul.addr %s1118, 16
          %s1120 = scalar_lea.hbm %s7, %s1119
          %s1122 = sshll.u32 %s1111, 4
          %s1123 = int_to_ptr.vmem [resolvable:$true] %s1122
          %1125 = dma.vmem_to_hbm [thread:$0]  %s1123, 32, %s1120, %s1108
        $region52: #{tpu_custom_call.1} parent=47 // pred_fallthru
          _
      $region48: #{tpu_custom_call.1} parent=5 // pred_fallthru
        _
      %p1126 = scmp.le.s32.totalorder 2, %s18
      // Predicated region
      $region53: #{tpu_custom_call.1} parent=5 // pred_check
        %p1127 = pneg %p1126
      $region54: #{tpu_custom_call.1} parent=5 // pred_check_branch
        %1129 = sbr.rel (%p1127) target = $region56
      $region55: #{tpu_custom_call.1} parent=5 // pred_region
        %s1130 = ssub.s32 %s18, 2
        // Predicated region
        $region57: #{tpu_custom_call.1} parent=55 // pred_check
          %p1131 = pneg %p199
        $region58: #{tpu_custom_call.1} parent=55 // pred_check_branch
          %1133 = sbr.rel (%p1131) target = $region60
        $region59: #{tpu_custom_call.1} parent=55 // pred_region
          %s1134 = sand.u32 %s184, 1
          %s1135 = scalar_lea.sflag [#allocation4], %s1134
          %s1136 = sand.u32 %s184, 1
          %s1137 = smul.addr %s1136, 2
          %s1138 = scalar_lea.vmem [#allocation3], %s1137
          %1139 = dma.done %s1135, 32
        $region60: #{tpu_custom_call.1} parent=55 // pred_fallthru
          _
      $region56: #{tpu_custom_call.1} parent=5 // pred_fallthru
        _
    $region6: #{tpu_custom_call.1} parent=1 // loop_footer
      %s22 = sadd.s32 1, %s18
    $region7: #{tpu_custom_call.1} parent=1 // loop_footer_branch
      %17 = sbr.rel target = $region3
    $region8: #{tpu_custom_call.1} parent=1 // loop_exit
      _
    %1140 = vsyncpa [#allocation4], 1
    %s1141 = scalar_lea.sflag [#allocation4], 1
    %1142 = vsyncpa %s1141, 1

</llo_original>
